<compile_context>
chip_gen: v7x
topology: tpu7x:2x2x1
jax: 0.10.0
libtpu: 0.0.40
codegen_flags: <defaults>
</compile_context>

<pallas_src>
import functools
import math

import jax
import jax.numpy as jnp
import numpy as np
from jax.experimental import pallas as pl
from jax.experimental.pallas import tpu as pltpu


def make_positional_encoding(dim: int, max_len: int = 43) -> jnp.ndarray:
    """Deterministic sinusoidal PE table, identical to the PyTorch __init__."""
    pe = np.zeros((max_len, dim), dtype=np.float32)
    position = np.arange(0.0, max_len, dtype=np.float32)[:, None]
    div_term = np.exp(np.arange(0.0, dim, 2, dtype=np.float32)
                      * -(math.log(10000.0) / dim))
    pe[:, 0::2] = np.sin(position * div_term)
    pe[:, 1::2] = np.cos(position * div_term)
    return jnp.asarray(pe)  # (max_len, dim)


def _mix_bits(x):
    # xxhash/murmur-style 32-bit finalizer on uint32. Plain VPU int ops only,
    # so it lowers on TPU and under interpret mode alike.
    x = x * jnp.uint32(0x9E3779B1)
    x = x ^ (x >> 15)
    x = x * jnp.uint32(0x85EBCA77)
    x = x ^ (x >> 13)
    x = x * jnp.uint32(0xC2B2AE3D)
    x = x ^ (x >> 16)
    return x


def _pe_dropout_kernel(seed_ref, x_ref, pe_ref, o_ref, *,
                       p: float, train: bool, row_len: int):
    # x_ref / o_ref: (tile_b, row_len); pe_ref: (1, row_len) (constant block).
    y = x_ref[...] + pe_ref[...]                      # sublane broadcast add
    if train and p > 0.0:
        tile_b = x_ref.shape[0]
        shape = (tile_b, row_len)
        row0 = (pl.program_id(0) * tile_b).astype(jnp.uint32)
        rows = jax.lax.broadcasted_iota(jnp.int32, shape, 0).astype(jnp.uint32) + row0
        cols = jax.lax.broadcasted_iota(jnp.int32, shape, 1).astype(jnp.uint32)
        # Global flat element index -> dropout mask independent of tiling.
        flat = rows * jnp.uint32(row_len) + cols
        seed = seed_ref[0].astype(jnp.uint32) * jnp.uint32(0x9E3779B9)
        bits = _mix_bits(flat ^ seed)
        # Integer-threshold compare: keep with probability (1 - p).
        threshold = jnp.uint32(min(int(p * (2.0 ** 32)), 2 ** 32 - 1))
        keep = bits >= threshold
        scale = jnp.float32(1.0 / (1.0 - p))
        y = jnp.where(keep, y * scale, jnp.float32(0.0))
    o_ref[...] = y.astype(o_ref.dtype)


def positional_encoding_forward(x: jnp.ndarray,
                                pe: jnp.ndarray,
                                *,
                                p: float = 0.1,
                                train: bool = False,
                                seed: int = 0) -> jnp.ndarray:
    """x: (B, S, D); pe: (max_len, D). Returns dropout(x + pe[:S])."""
    B, S, D = x.shape
    assert S <= pe.shape[0] and D == pe.shape[1]
    row_len = S * D

    # Lane-dense layout: one row per batch element, (seq, feature) flattened
    # onto the lane axis; last block dim == full row -> unmasked stores.
    x2 = x.reshape(B, row_len)
    pe2 = pe[:S].reshape(1, row_len)

    # Largest batch tile with a block <= ~4 MiB: fits comfortably in the
    # default scoped VMEM on every generation (incl. v7x's 64 MiB physical)
    # with double-buffered input + output, while amortizing the ~0.35 us
    # per-grid-step overhead.
    bytes_per_row = row_len * jnp.dtype(x.dtype).itemsize
    rows_budget = max(1, (4 * 1024 * 1024) // max(bytes_per_row, 1))
    if rows_budget >= B:
        tile_b = B                                    # full dim -> always legal
    else:
        tile_b = min(max(8, (rows_budget // 8) * 8), B)
    grid_b = pl.cdiv(B, tile_b)

    kernel = functools.partial(_pe_dropout_kernel,
                               p=float(p), train=bool(train), row_len=row_len)
    seed_arr = jnp.array([seed], dtype=jnp.int32)

    out2 = pl.pallas_call(
        kernel,
        out_shape=jax.ShapeDtypeStruct((B, row_len), x.dtype),
        grid_spec=pltpu.PrefetchScalarGridSpec(
            num_scalar_prefetch=1,                    # seed lands in SMEM
            grid=(grid_b,),
            in_specs=[
                pl.BlockSpec((tile_b, row_len), lambda b, seed: (b, 0)),
                pl.BlockSpec((1, row_len), lambda b, seed: (0, 0)),  # constant
            ],
            out_specs=pl.BlockSpec((tile_b, row_len), lambda b, seed: (b, 0)),
        ),
        compiler_params=pltpu.CompilerParams(
            dimension_semantics=("parallel",)),
    )(seed_arr, x2, pe2)

    return out2.reshape(B, S, D)


if __name__ == "__main__":
    B, S, D = 2, 8, 32          # batch, seq, hidden
    MAX_LEN = 43

    key = jax.random.PRNGKey(0)
    x = jax.random.normal(key, (B, S, D), dtype=jnp.float32)
    pe = make_positional_encoding(D, MAX_LEN)

    # Eval-mode forward (dropout is identity), matching module.eval() in torch.
    out = jax.block_until_ready(
        positional_encoding_forward(x, pe, p=0.1, train=False))
    ref = np.asarray(x) + np.asarray(pe)[:S][None, :, :]
    np.testing.assert_allclose(np.asarray(out), ref, rtol=1e-6, atol=1e-6)

    # Training path: every element must be either dropped (0) or scaled by
    # 1/(1-p).  Exact mask matches inverted-dropout semantics; the RNG stream
    # itself is implementation-defined (cannot match torch).
    out_train = jax.block_until_ready(
        positional_encoding_forward(x, pe, p=0.1, train=True, seed=123))
    scaled = ref / (1.0 - 0.1)
    ot = np.asarray(out_train)
    ok = np.isclose(ot, 0.0, atol=1e-6) | np.isclose(ot, scaled, rtol=1e-5, atol=1e-6)
    assert ok.all()

    print("KERNEL_OK")
</pallas_src>

<mosaic_0001>
module attributes {stable_mosaic.version = 11 : i64} {
  func.func @_pe_dropout_kernel(%arg0: i32, %arg1: memref<1xi32, #tpu.memory_space<smem>>, %arg2: memref<2x256xf32, #tpu.memory_space<vmem>>, %arg3: memref<1x256xf32, #tpu.memory_space<vmem>>, %arg4: memref<2x256xf32, #tpu.memory_space<vmem>>) attributes {dimension_semantics = [#tpu.dimension_semantics<parallel>], iteration_bounds = array<i64: 1>, scalar_prefetch = 1 : i64, scratch_operands = 0 : i64, tpu.core_type = #tpu.core_type<tc>, window_params = [{transform_indices = @transform_0, window_bounds = array<i64: 2, 256>}, {pipeline_mode = #tpu.pipeline_mode<synchronous>, transform_indices = @transform_1, window_bounds = array<i64: 1, 256>}, {transform_indices = @transform_2, window_bounds = array<i64: 2, 256>}]} {
    %c0 = arith.constant 0 : index
    %c0_0 = arith.constant 0 : index
    %0 = vector.load %arg2[%c0, %c0_0] : memref<2x256xf32, #tpu.memory_space<vmem>>, vector<2x256xf32>
    %c0_1 = arith.constant 0 : index
    %c0_2 = arith.constant 0 : index
    %1 = vector.load %arg3[%c0_1, %c0_2] : memref<1x256xf32, #tpu.memory_space<vmem>>, vector<1x256xf32>
    %2 = vector.broadcast %1 : vector<1x256xf32> to vector<2x256xf32>
    %3 = arith.addf %0, %2 : vector<2x256xf32>
    %c0_3 = arith.constant 0 : index
    %c0_4 = arith.constant 0 : index
    %4 = vector.load %arg4[%c0_3, %c0_4] : memref<2x256xf32, #tpu.memory_space<vmem>>, vector<2x256xf32>
    tpu.vector_store %arg4[%c0_3, %c0_4], %3 {strides = array<i32>} : memref<2x256xf32, #tpu.memory_space<vmem>>, vector<2x256xf32>,
    return
  }
  func.func @transform_0(%arg0: i32, %arg1: memref<1xi32, #tpu.memory_space<smem>>) -> (i32, i32) {
    %c0_i32 = arith.constant 0 : i32
    %c0_i32_0 = arith.constant 0 : i32
    return %arg0, %c0_i32 : i32, i32
  }
  func.func @transform_1(%arg0: i32, %arg1: memref<1xi32, #tpu.memory_space<smem>>) -> (i32, i32) {
    %c0_i32 = arith.constant 0 : i32
    %c0_i32_0 = arith.constant 0 : i32
    %c0_i32_1 = arith.constant 0 : i32
    return %c0_i32, %c0_i32_0 : i32, i32
  }
  func.func @transform_2(%arg0: i32, %arg1: memref<1xi32, #tpu.memory_space<smem>>) -> (i32, i32) {
    %c0_i32 = arith.constant 0 : i32
    %c0_i32_0 = arith.constant 0 : i32
    return %arg0, %c0_i32 : i32, i32
  }
}

</mosaic_0001>

<llo_original>
// kernel: tpu_custom_call.1
$region0: #{tpu_custom_call.1}
  #allocation0 [shape = 'u32[]', space=smem, size = 0x4, offset = 0x4, fixed_abs, tag = 'smem constant byte address 0x4 - core index']
  #allocation1 [shape = 'u32[144,128]{1,0:T(1,128)}', space=vmem, size = 0x12000, scoped, tag = 'internal scratch']
  #allocation2 [shape = 's32[1]{0}', space=sflag, size = 0x4, scoped, tag = 'scoped memory for tpu_custom_call.1']
  #allocation3 [shape = 's32[1]{0:T(128)S(6)}', space=smem, size = 0x200, scoped, tag = 'prefetched SMEM operand 0']
  %s0 = inlined_call_operand.<no memory space> [shape: s32[1], index: 0, kind: input, shape index: {}]
  %s1 = inlined_call_operand.hbm [shape: f32[2,256], index: 1, kind: input, shape index: {}]
  %s2 = inlined_call_operand.vmem [shape: f32[1,256], index: 2, kind: input, shape index: {}]
  %s3 = inlined_call_operand.hbm [shape: f32[2,256], index: 3, kind: output, shape index: {}]
  %s4 = sld [smem:[#allocation0]]
  $region22: #{tpu_custom_call.1} parent=0
    _
  %s6 = ssub.s32 1, %s4
  %s7 = scalar_select 0, %s6, %s4
  %8 = sst [smem:[#allocation3]] %s0
  $region1: #{tpu_custom_call.1} parent=0
    #allocation4 [shape = 'u8[2048]{0}', space=vmem, size = 0x800, scoped, tag = 'input window, operand 1, single buffered']
    #allocation5 [shape = 's32[1]{0}', space=sflag, size = 0x4, scoped, tag = 'scoped memory for tpu_custom_call.1']
    #allocation6 [shape = 's32[1]{0}', space=sflag, size = 0x4, scoped, tag = 'scoped memory for tpu_custom_call.1']
    #allocation7 [shape = 'u8[2048]{0}', space=vmem, size = 0x800, scoped, tag = 'output window, operand 0, single buffered']
    %9 = vsyncpa [#allocation5], 0
    %10 = vsyncpa [#allocation6], 0
    // Predicated region
    $region2: #{tpu_custom_call.1} parent=1 // pred_check
      _
    $region3: #{tpu_custom_call.1} parent=1 // pred_check_branch
      %12 = sbr.rel (0) target = $region5
    $region4: #{tpu_custom_call.1} parent=1 // pred_region
      %s14 = ssub.s32 64, 64
      %15 = vsyncadd [#allocation5], %s14
      %s17 = sshll.u32 [#allocation4], 4
      %s18 = int_to_ptr.vmem [resolvable:$true] %s17
      %20 = dma.hbm_to_vmem [thread:$0]  %s1, 64, %s18, [#allocation5]
    $region5: #{tpu_custom_call.1} parent=1 // pred_fallthru
      _
    // Predicated region
    $region6: #{tpu_custom_call.1} parent=1 // pred_check
      _
    $region7: #{tpu_custom_call.1} parent=1 // pred_check_branch
      %22 = sbr.rel (0) target = $region9
    $region8: #{tpu_custom_call.1} parent=1 // pred_region
      _
    $region9: #{tpu_custom_call.1} parent=1 // pred_fallthru
      _
    // Predicated region
    $region10: #{tpu_custom_call.1} parent=1 // pred_check
      _
    $region11: #{tpu_custom_call.1} parent=1 // pred_check_branch
      %24 = sbr.rel (0) target = $region13
    $region12: #{tpu_custom_call.1} parent=1 // pred_region
      %25 = dma.done [#allocation5], 64
    $region13: #{tpu_custom_call.1} parent=1 // pred_fallthru
      _
    %v26 = vld [vmem:[#allocation4] sm:$0xf]
    %v27 = vld [vmem:[%s2] sm:$0x3]
    %v29 = vlaneseq
    %v30 = vshrl.u32 %v29, 7
    %v31 = vsub.s32 0, %v30
    %v32 = vrot.slane %v27, %v31
    %v33 = vlaneseq
    %v34 = vshrl.u32 %v33, 7
    %v35 = vsub.s32 1, %v34
    %v36 = vrot.slane %v27, %v35
    %v37 = vcombine.low %v32, %v36
    %v39 = vunpack.c.l.s4 1983009808
    %v40 = vunpack.c.0.s8 %v39
    %v41 = vlaneseq
    %v42 = vshrl.u32 %v41, 7
    %v43 = vsub.s32 %v40, %v42
    %v44 = vrot.slane %v37, %v43
    %v46 = vadd.f32 %v26, %v44
    %47 = vst [vmem:[#allocation7] sm:$0xf] %v46
    // Predicated region
    $region14: #{tpu_custom_call.1} parent=1 // pred_check
      _
    $region15: #{tpu_custom_call.1} parent=1 // pred_check_branch
      %49 = sbr.rel (0) target = $region17
    $region16: #{tpu_custom_call.1} parent=1 // pred_region
      %s51 = ssub.s32 64, 64
      %52 = vsyncadd [#allocation6], %s51
      %s54 = sshll.u32 [#allocation7], 4
      %s55 = int_to_ptr.vmem [resolvable:$true] %s54
      %57 = dma.vmem_to_hbm [thread:$0]  %s55, 64, %s3, [#allocation6]
    $region17: #{tpu_custom_call.1} parent=1 // pred_fallthru
      _
    // Predicated region
    $region18: #{tpu_custom_call.1} parent=1 // pred_check
      _
    $region19: #{tpu_custom_call.1} parent=1 // pred_check_branch
      %59 = sbr.rel (0) target = $region21
    $region20: #{tpu_custom_call.1} parent=1 // pred_region
      %60 = dma.done [#allocation6], 64
    $region21: #{tpu_custom_call.1} parent=1 // pred_fallthru
      _
    %61 = vsyncpa [#allocation5], 1
    %62 = vsyncpa [#allocation6], 1

</llo_original>
